<compile_context>
chip_gen: v5e
topology: v5e:2x2
jax: 0.10.0
libtpu: 0.0.40
codegen_flags: <defaults>
</compile_context>

<pallas_src>
import functools

import jax
import jax.numpy as jnp
from jax.experimental import pallas as pl
from jax.experimental.pallas import tpu as pltpu

# ---------------- model dimensions (small, synthetic) ----------------
VOCAB = 128      # lane-dense LM head / one-hot embedding width
HIDDEN = 32
BATCH = 2
SEQ = 8
IGNORE = -100    # ignore-index for the causal-LM shift


# ---------------- fused Pallas kernel: embed + MLP + logits + CE + KL --------
def _fused_lm_loss_kernel(ids_ref, lbl_ref, emb_ref, w1_ref, b1_ref,
                          w2_ref, b2_ref, logits_ref, ce_ref, kl_ref):
    n = ids_ref.shape[0]
    col = jax.lax.broadcasted_iota(jnp.int32, (n, VOCAB), 1)        # [N, V]

    # Embedding lookup as one-hot @ embed (MXU matmul, V = 128 lanes).
    onehot_ids = (col == ids_ref[...]).astype(jnp.float32)          # [N, V]
    x = jnp.dot(onehot_ids, emb_ref[...],
                preferred_element_type=jnp.float32)                 # [N, H]

    # 2-layer LM: tanh MLP + LM head (lane-dense V=128 output).
    h = jnp.tanh(
        jnp.dot(x, w1_ref[...], preferred_element_type=jnp.float32)
        + b1_ref[...]
    )                                                               # [N, H]
    logits = (
        jnp.dot(h, w2_ref[...], preferred_element_type=jnp.float32)
        + b2_ref[...]
    )                                                               # [N, V]
    logits_ref[...] = logits

    # Single log-softmax shared by the CE loss and the distill KL.
    shifted = logits - jnp.max(logits, axis=-1, keepdims=True)
    logp = shifted - jnp.log(jnp.sum(jnp.exp(shifted), axis=-1, keepdims=True))
    p = jnp.exp(logp)

    # Causal-LM cross-entropy (labels pre-shifted in the wrapper; <0 = ignore).
    lbl = lbl_ref[...]                                              # [N, 1]
    onehot_lbl = (col == lbl).astype(jnp.float32)
    valid = (lbl >= 0).astype(jnp.float32)
    ce_rows = -jnp.sum(onehot_lbl * logp, axis=-1, keepdims=True) * valid
    n_valid = jnp.maximum(jnp.sum(valid), 1.0)
    ce_ref[0] = jnp.sum(ce_rows) / n_valid

    # Distill KL(teacher || student) over all rows.  The teacher half of the
    # duplicated batch is bitwise identical to the student half (deterministic
    # forward, shared params), so the teacher log-probs equal `logp` and the
    # log-softmax is computed exactly once.
    # TODO(synk): the real SelfDistillMutator hooks intermediate layers of an
    # arbitrary supernet; only logit-level self-distillation is modeled here.
    logp_t = logp
    kl_rows = jnp.sum(p * (logp_t - logp), axis=-1, keepdims=True)
    kl_ref[0] = jnp.sum(kl_rows) / float(n)


def fused_lm_forward(params, ids_flat, lbl_flat):
    n = ids_flat.shape[0]
    logits, ce, kl = pl.pallas_call(
        _fused_lm_loss_kernel,
        out_shape=(
            jax.ShapeDtypeStruct((n, VOCAB), jnp.float32),
            jax.ShapeDtypeStruct((1,), jnp.float32),
            jax.ShapeDtypeStruct((1,), jnp.float32),
        ),
        grid=(1,),
        in_specs=[
            pl.BlockSpec((n, 1), lambda i: (0, 0)),
            pl.BlockSpec((n, 1), lambda i: (0, 0)),
            pl.BlockSpec((VOCAB, HIDDEN), lambda i: (0, 0)),
            pl.BlockSpec((HIDDEN, HIDDEN), lambda i: (0, 0)),
            pl.BlockSpec((1, HIDDEN), lambda i: (0, 0)),
            pl.BlockSpec((HIDDEN, VOCAB), lambda i: (0, 0)),
            pl.BlockSpec((1, VOCAB), lambda i: (0, 0)),
        ],
        out_specs=(
            pl.BlockSpec((n, VOCAB), lambda i: (0, 0)),
            pl.BlockSpec(memory_space=pltpu.MemorySpace.SMEM),
            pl.BlockSpec(memory_space=pltpu.MemorySpace.SMEM),
        ),
        compiler_params=pltpu.CompilerParams(
            dimension_semantics=("arbitrary",)
        ),
    )(ids_flat, lbl_flat, params["embed"], params["w1"], params["b1"],
      params["w2"], params["b2"])
    return logits, ce[0], kl[0]


# ---------------- synthetic causal LM (the wrapped `self.model`) -------------
def init_params(key):
    k0, k1, k2, k3, k4 = jax.random.split(key, 5)
    return {
        "embed": jax.random.normal(k0, (VOCAB, HIDDEN), jnp.float32) * 0.02,
        "w1": jax.random.normal(k1, (HIDDEN, HIDDEN), jnp.float32) * 0.05,
        "b1": jax.random.normal(k2, (1, HIDDEN), jnp.float32) * 0.01,
        "w2": jax.random.normal(k3, (HIDDEN, VOCAB), jnp.float32) * 0.05,
        "b2": jax.random.normal(k4, (1, VOCAB), jnp.float32) * 0.01,
    }


def model_forward(params, input_ids, labels=None):
    """Returns (model output dict, distill KL scalar from the fused kernel)."""
    b, s = input_ids.shape
    ids_flat = input_ids.reshape(-1, 1).astype(jnp.int32)
    if labels is not None:
        # Standard causal-LM shift: position t predicts labels[:, t+1];
        # the last position of each sequence is ignored (label < 0).
        shifted = jnp.concatenate(
            [labels[:, 1:], jnp.full((b, 1), IGNORE, labels.dtype)], axis=1)
    else:
        shifted = jnp.full((b, s), IGNORE, jnp.int32)
    lbl_flat = shifted.reshape(-1, 1).astype(jnp.int32)

    logits_flat, ce, kl = fused_lm_forward(params, ids_flat, lbl_flat)
    out = {"logits": logits_flat.reshape(b, s, VOCAB)}
    if labels is not None:
        out["loss"] = ce
    return out, kl


# ---------------- SelfDistillAlgorithm.forward -------------------------------
# TODO(synk): attention_mask / position_ids / past_key_values / use_cache etc.
# are passthrough args to an arbitrary HF-style model and are not modeled.
def self_distill_forward(params, input_ids, labels=None, training=True):
    if training:
        # The original module duplicates the batch; the second half of the LM
        # forward is bitwise identical (deterministic model, shared params), so
        # compute it once and reuse it as the stop-gradient teacher inside the
        # fused kernel.  out['logits'] keeps the doubled-batch shape, and
        # out['loss'] is overwritten by the distill loss, matching
        # `out['loss'] = self.mutator.gather_distill_loss()`.
        out, kl = model_forward(params, input_ids, labels)
        logits = out["logits"]
        out["logits"] = jnp.concatenate(
            [logits, jax.lax.stop_gradient(logits)], axis=0)
        out["loss"] = kl
        return out
    else:
        out, _ = model_forward(params, input_ids, labels)
        return out


if __name__ == "__main__":
    key = jax.random.PRNGKey(0)
    pkey, ikey = jax.random.split(key)
    params = init_params(pkey)

    input_ids = jax.random.randint(ikey, (BATCH, SEQ), 0, VOCAB, dtype=jnp.int32)
    labels = input_ids  # standard LM self-labels

    train_fn = jax.jit(functools.partial(self_distill_forward, training=True))
    out = train_fn(params, input_ids, labels)
    jax.block_until_ready(out)

    eval_fn = jax.jit(functools.partial(self_distill_forward, training=False))
    out_eval = eval_fn(params, input_ids, labels)
    jax.block_until_ready(out_eval)

    assert out["logits"].shape == (2 * BATCH, SEQ, VOCAB)
    assert out["loss"].shape == ()
    assert out_eval["logits"].shape == (BATCH, SEQ, VOCAB)
    assert out_eval["loss"].shape == ()
    print("KERNEL_OK")
</pallas_src>

<mosaic_0001>
module attributes {stable_mosaic.version = 11 : i64} {
  func.func @_fused_lm_loss_kernel(%arg0: i32, %arg1: memref<16x1xi32, #tpu.memory_space<vmem>>, %arg2: memref<16x1xi32, #tpu.memory_space<vmem>>, %arg3: memref<128x32xf32, #tpu.memory_space<vmem>>, %arg4: memref<32x32xf32, #tpu.memory_space<vmem>>, %arg5: memref<1x32xf32, #tpu.memory_space<vmem>>, %arg6: memref<32x128xf32, #tpu.memory_space<vmem>>, %arg7: memref<1x128xf32, #tpu.memory_space<vmem>>, %arg8: memref<16x128xf32, #tpu.memory_space<vmem>>, %arg9: memref<1xf32, #tpu.memory_space<smem>>, %arg10: memref<1xf32, #tpu.memory_space<smem>>) attributes {dimension_semantics = [#tpu.dimension_semantics<arbitrary>], iteration_bounds = array<i64: 1>, scalar_prefetch = 0 : i64, scratch_operands = 0 : i64, tpu.core_type = #tpu.core_type<tc>, window_params = [{pipeline_mode = #tpu.pipeline_mode<synchronous>, transform_indices = @transform_0, window_bounds = array<i64: 16, 1>}, {pipeline_mode = #tpu.pipeline_mode<synchronous>, transform_indices = @transform_1, window_bounds = array<i64: 16, 1>}, {pipeline_mode = #tpu.pipeline_mode<synchronous>, transform_indices = @transform_2, window_bounds = array<i64: 128, 32>}, {pipeline_mode = #tpu.pipeline_mode<synchronous>, transform_indices = @transform_3, window_bounds = array<i64: 32, 32>}, {pipeline_mode = #tpu.pipeline_mode<synchronous>, transform_indices = @transform_4, window_bounds = array<i64: 1, 32>}, {pipeline_mode = #tpu.pipeline_mode<synchronous>, transform_indices = @transform_5, window_bounds = array<i64: 32, 128>}, {pipeline_mode = #tpu.pipeline_mode<synchronous>, transform_indices = @transform_6, window_bounds = array<i64: 1, 128>}, {pipeline_mode = #tpu.pipeline_mode<synchronous>, transform_indices = @transform_7, window_bounds = array<i64: 16, 128>}, {transform_indices = @transform_8, window_bounds = array<i64: 1>}, {transform_indices = @transform_9, window_bounds = array<i64: 1>}]} {
    %0 = tpu.iota {dimensions = array<i32: 1>} : vector<16x128xi32>
    %c0 = arith.constant 0 : index
    %c0_0 = arith.constant 0 : index
    %1 = vector.load %arg1[%c0, %c0_0] : memref<16x1xi32, #tpu.memory_space<vmem>>, vector<16x1xi32>
    %2 = vector.broadcast %1 : vector<16x1xi32> to vector<16x128xi32>
    %3 = arith.cmpi eq, %0, %2 : vector<16x128xi32>
    %4 = arith.extui %3 : vector<16x128xi1> to vector<16x128xi32>
    %5 = arith.sitofp %4 : vector<16x128xi32> to vector<16x128xf32>
    %c0_1 = arith.constant 0 : index
    %c0_2 = arith.constant 0 : index
    %6 = vector.load %arg3[%c0_1, %c0_2] : memref<128x32xf32, #tpu.memory_space<vmem>>, vector<128x32xf32>
    %cst = arith.constant dense<0.000000e+00> : vector<16x32xf32>
    %7 = tpu.matmul %5, %6, %cst {dimension_numbers = #tpu.dot_dimension_numbers<[1], [0], [0], [1], [0, 0, 1, 1], [], []>} : vector<16x128xf32>, vector<128x32xf32>, vector<16x32xf32> -> vector<16x32xf32>
    %c0_3 = arith.constant 0 : index
    %c0_4 = arith.constant 0 : index
    %8 = vector.load %arg4[%c0_3, %c0_4] : memref<32x32xf32, #tpu.memory_space<vmem>>, vector<32x32xf32>
    %cst_5 = arith.constant dense<0.000000e+00> : vector<16x32xf32>
    %9 = tpu.matmul %7, %8, %cst_5 {dimension_numbers = #tpu.dot_dimension_numbers<[1], [0], [0], [1], [0, 0, 1, 1], [], []>} : vector<16x32xf32>, vector<32x32xf32>, vector<16x32xf32> -> vector<16x32xf32>
    %c0_6 = arith.constant 0 : index
    %c0_7 = arith.constant 0 : index
    %10 = vector.load %arg5[%c0_6, %c0_7] : memref<1x32xf32, #tpu.memory_space<vmem>>, vector<1x32xf32>
    %11 = vector.broadcast %10 : vector<1x32xf32> to vector<16x32xf32>
    %12 = arith.addf %9, %11 : vector<16x32xf32>
    %13 = math.tanh %12 : vector<16x32xf32>
    %c0_8 = arith.constant 0 : index
    %c0_9 = arith.constant 0 : index
    %14 = vector.load %arg6[%c0_8, %c0_9] : memref<32x128xf32, #tpu.memory_space<vmem>>, vector<32x128xf32>
    %cst_10 = arith.constant dense<0.000000e+00> : vector<16x128xf32>
    %15 = tpu.matmul %13, %14, %cst_10 {dimension_numbers = #tpu.dot_dimension_numbers<[1], [0], [0], [1], [0, 0, 1, 1], [], []>} : vector<16x32xf32>, vector<32x128xf32>, vector<16x128xf32> -> vector<16x128xf32>
    %c0_11 = arith.constant 0 : index
    %c0_12 = arith.constant 0 : index
    %16 = vector.load %arg7[%c0_11, %c0_12] : memref<1x128xf32, #tpu.memory_space<vmem>>, vector<1x128xf32>
    %17 = vector.broadcast %16 : vector<1x128xf32> to vector<16x128xf32>
    %18 = arith.addf %15, %17 : vector<16x128xf32>
    %c0_13 = arith.constant 0 : index
    %c0_14 = arith.constant 0 : index
    %19 = vector.load %arg8[%c0_13, %c0_14] : memref<16x128xf32, #tpu.memory_space<vmem>>, vector<16x128xf32>
    tpu.vector_store %arg8[%c0_13, %c0_14], %18 {strides = array<i32>} : memref<16x128xf32, #tpu.memory_space<vmem>>, vector<16x128xf32>,
    %cst_15 = arith.constant dense<0xFF800000> : vector<16xf32>
    %20 = vector.multi_reduction <maximumf>, %18, %cst_15 [1] : vector<16x128xf32> to vector<16xf32>
    %21 = vector.shape_cast %20 : vector<16xf32> to vector<16x1xf32>
    %22 = vector.broadcast %21 : vector<16x1xf32> to vector<16x128xf32>
    %23 = arith.subf %18, %22 : vector<16x128xf32>
    %24 = math.exp %23 : vector<16x128xf32>
    %cst_16 = arith.constant dense<0.000000e+00> : vector<16xf32>
    %25 = vector.multi_reduction <add>, %24, %cst_16 [1] : vector<16x128xf32> to vector<16xf32>
    %26 = vector.shape_cast %25 : vector<16xf32> to vector<16x1xf32>
    %27 = math.log %26 : vector<16x1xf32>
    %28 = vector.broadcast %27 : vector<16x1xf32> to vector<16x128xf32>
    %29 = arith.subf %23, %28 : vector<16x128xf32>
    %30 = math.exp %29 : vector<16x128xf32>
    %c0_17 = arith.constant 0 : index
    %c0_18 = arith.constant 0 : index
    %31 = vector.load %arg2[%c0_17, %c0_18] : memref<16x1xi32, #tpu.memory_space<vmem>>, vector<16x1xi32>
    %32 = vector.broadcast %31 : vector<16x1xi32> to vector<16x128xi32>
    %33 = arith.cmpi eq, %0, %32 : vector<16x128xi32>
    %34 = arith.extui %33 : vector<16x128xi1> to vector<16x128xi32>
    %35 = arith.sitofp %34 : vector<16x128xi32> to vector<16x128xf32>
    %c0_i32 = arith.constant 0 : i32
    %36 = vector.broadcast %c0_i32 : i32 to vector<16x1xi32>
    %37 = arith.cmpi sge, %31, %36 : vector<16x1xi32>
    %38 = arith.extui %37 : vector<16x1xi1> to vector<16x1xi32>
    %39 = arith.sitofp %38 : vector<16x1xi32> to vector<16x1xf32>
    %40 = arith.mulf %35, %29 : vector<16x128xf32>
    %cst_19 = arith.constant dense<0.000000e+00> : vector<16xf32>
    %41 = vector.multi_reduction <add>, %40, %cst_19 [1] : vector<16x128xf32> to vector<16xf32>
    %42 = vector.shape_cast %41 : vector<16xf32> to vector<16x1xf32>
    %cst_20 = arith.constant 0.000000e+00 : f32
    %43 = vector.broadcast %cst_20 : f32 to vector<16x1xf32>
    %44 = arith.subf %43, %42 : vector<16x1xf32>
    %45 = arith.mulf %44, %39 : vector<16x1xf32>
    %46 = vector.shape_cast %39 : vector<16x1xf32> to vector<1x16x1xf32>
    %cst_21 = arith.constant dense<0.000000e+00> : vector<1xf32>
    %47 = vector.multi_reduction <add>, %46, %cst_21 [1, 2] : vector<1x16x1xf32> to vector<1xf32>
    %48 = vector.shape_cast %47 : vector<1xf32> to vector<1x1x1xf32>
    %49 = vector.extract %48[0, 0, 0] : f32 from vector<1x1x1xf32>
    %cst_22 = arith.constant 1.000000e+00 : f32
    %50 = arith.maximumf %49, %cst_22 : f32
    %51 = vector.shape_cast %45 : vector<16x1xf32> to vector<1x16x1xf32>
    %cst_23 = arith.constant dense<0.000000e+00> : vector<1xf32>
    %52 = vector.multi_reduction <add>, %51, %cst_23 [1, 2] : vector<1x16x1xf32> to vector<1xf32>
    %53 = vector.shape_cast %52 : vector<1xf32> to vector<1x1x1xf32>
    %54 = vector.extract %53[0, 0, 0] : f32 from vector<1x1x1xf32>
    %55 = arith.divf %54, %50 : f32
    %c0_24 = arith.constant 0 : index
    %56 = memref.load %arg9[%c0_24] : memref<1xf32, #tpu.memory_space<smem>>
    memref.store %55, %arg9[%c0_24] : memref<1xf32, #tpu.memory_space<smem>>
    %57 = arith.subf %29, %29 : vector<16x128xf32>
    %58 = arith.mulf %30, %57 : vector<16x128xf32>
    %cst_25 = arith.constant dense<0.000000e+00> : vector<16xf32>
    %59 = vector.multi_reduction <add>, %58, %cst_25 [1] : vector<16x128xf32> to vector<16xf32>
    %60 = vector.shape_cast %59 : vector<16xf32> to vector<16x1xf32>
    %61 = vector.shape_cast %60 : vector<16x1xf32> to vector<1x16x1xf32>
    %cst_26 = arith.constant dense<0.000000e+00> : vector<1xf32>
    %62 = vector.multi_reduction <add>, %61, %cst_26 [1, 2] : vector<1x16x1xf32> to vector<1xf32>
    %63 = vector.shape_cast %62 : vector<1xf32> to vector<1x1x1xf32>
    %64 = vector.extract %63[0, 0, 0] : f32 from vector<1x1x1xf32>
    %cst_27 = arith.constant 1.600000e+01 : f32
    %65 = arith.divf %64, %cst_27 : f32
    %c0_28 = arith.constant 0 : index
    %66 = memref.load %arg10[%c0_28] : memref<1xf32, #tpu.memory_space<smem>>
    memref.store %65, %arg10[%c0_28] : memref<1xf32, #tpu.memory_space<smem>>
    return
  }
  func.func @transform_0(%arg0: i32) -> (i32, i32) {
    %c0_i32 = arith.constant 0 : i32
    %c0_i32_0 = arith.constant 0 : i32
    %c0_i32_1 = arith.constant 0 : i32
    return %c0_i32, %c0_i32_0 : i32, i32
  }
  func.func @transform_1(%arg0: i32) -> (i32, i32) {
    %c0_i32 = arith.constant 0 : i32
    %c0_i32_0 = arith.constant 0 : i32
    %c0_i32_1 = arith.constant 0 : i32
    return %c0_i32, %c0_i32_0 : i32, i32
  }
  func.func @transform_2(%arg0: i32) -> (i32, i32) {
    %c0_i32 = arith.constant 0 : i32
    %c0_i32_0 = arith.constant 0 : i32
    %c0_i32_1 = arith.constant 0 : i32
    return %c0_i32, %c0_i32_0 : i32, i32
  }
  func.func @transform_3(%arg0: i32) -> (i32, i32) {
    %c0_i32 = arith.constant 0 : i32
    %c0_i32_0 = arith.constant 0 : i32
    %c0_i32_1 = arith.constant 0 : i32
    return %c0_i32, %c0_i32_0 : i32, i32
  }
  func.func @transform_4(%arg0: i32) -> (i32, i32) {
    %c0_i32 = arith.constant 0 : i32
    %c0_i32_0 = arith.constant 0 : i32
    %c0_i32_1 = arith.constant 0 : i32
    return %c0_i32, %c0_i32_0 : i32, i32
  }
  func.func @transform_5(%arg0: i32) -> (i32, i32) {
    %c0_i32 = arith.constant 0 : i32
    %c0_i32_0 = arith.constant 0 : i32
    %c0_i32_1 = arith.constant 0 : i32
    return %c0_i32, %c0_i32_0 : i32, i32
  }
  func.func @transform_6(%arg0: i32) -> (i32, i32) {
    %c0_i32 = arith.constant 0 : i32
    %c0_i32_0 = arith.constant 0 : i32
    %c0_i32_1 = arith.constant 0 : i32
    return %c0_i32, %c0_i32_0 : i32, i32
  }
  func.func @transform_7(%arg0: i32) -> (i32, i32) {
    %c0_i32 = arith.constant 0 : i32
    %c0_i32_0 = arith.constant 0 : i32
    %c0_i32_1 = arith.constant 0 : i32
    return %c0_i32, %c0_i32_0 : i32, i32
  }
  func.func @transform_8(%arg0: i32) -> i32 {
    %c0_i32 = arith.constant 0 : i32
    %c0_i32_0 = arith.constant 0 : i32
    return %c0_i32 : i32
  }
  func.func @transform_9(%arg0: i32) -> i32 {
    %c0_i32 = arith.constant 0 : i32
    %c0_i32_0 = arith.constant 0 : i32
    return %c0_i32 : i32
  }
}

</mosaic_0001>

<llo_original>
// kernel: self_distill_forward.1
$region0: #{self_distill_forward.1}
  #allocation0 [shape = 'u32[]', space=smem, size = 0x4, offset = 0x4, fixed_abs, tag = 'smem constant byte address 0x4 - core index']
  #allocation1 [shape = 'u32[72,128]{1,0:T(1,128)}', space=vmem, size = 0x9000, scoped, tag = 'internal scratch']
  %s0 = inlined_call_operand.vmem [shape: s32[16,1], index: 0, kind: input, shape index: {}]
  %s1 = inlined_call_operand.vmem [shape: s32[16,1], index: 1, kind: input, shape index: {}]
  %s2 = inlined_call_operand.vmem [shape: f32[128,32], index: 2, kind: input, shape index: {}]
  %s3 = inlined_call_operand.vmem [shape: f32[32,32], index: 3, kind: input, shape index: {}]
  %s4 = inlined_call_operand.vmem [shape: f32[1,32], index: 4, kind: input, shape index: {}]
  %s5 = inlined_call_operand.vmem [shape: f32[32,128], index: 5, kind: input, shape index: {}]
  %s6 = inlined_call_operand.vmem [shape: f32[1,128], index: 6, kind: input, shape index: {}]
  %s7 = inlined_call_operand.vmem [shape: f32[16,128], index: 7, kind: output, shape index: {0}]
  %s8 = inlined_call_operand.hbm [shape: f32[1], index: 8, kind: output, shape index: {1}]
  %s9 = inlined_call_operand.hbm [shape: f32[1], index: 9, kind: output, shape index: {2}]
  %10 = xla_tuple %s7, %s8, %s9
  %s11 = sld [smem:[#allocation0]]
  $region54: #{self_distill_forward.1} parent=0
    _
  %s13 = ssub.s32 1, %s11
  %s14 = scalar_select 0, %s13, %s11
  $region1: #{self_distill_forward.1} parent=0
    #allocation2 [shape = 'u8[512]{0}', space=smem, size = 0x200, scoped, tag = 'output window, operand 1, single buffered']
    #allocation3 [shape = 's32[1]{0}', space=sflag, size = 0x4, scoped, tag = 'scoped memory for self_distill_forward.1']
    #allocation4 [shape = 'u8[512]{0}', space=smem, size = 0x200, scoped, tag = 'output window, operand 2, single buffered']
    #allocation5 [shape = 's32[1]{0}', space=sflag, size = 0x4, scoped, tag = 'scoped memory for self_distill_forward.1']
    %15 = vsyncpa [#allocation3], 0
    %16 = vsyncpa [#allocation5], 0
    // Predicated region
    $region2: #{self_distill_forward.1} parent=1 // pred_check
      _
    $region3: #{self_distill_forward.1} parent=1 // pred_check_branch
      %18 = sbr.rel (0) target = $region5
    $region4: #{self_distill_forward.1} parent=1 // pred_region
      _
    $region5: #{self_distill_forward.1} parent=1 // pred_fallthru
      _
    // Predicated region
    $region6: #{self_distill_forward.1} parent=1 // pred_check
      _
    $region7: #{self_distill_forward.1} parent=1 // pred_check_branch
      %20 = sbr.rel (0) target = $region9
    $region8: #{self_distill_forward.1} parent=1 // pred_region
      _
    $region9: #{self_distill_forward.1} parent=1 // pred_fallthru
      _
    // Predicated region
    $region10: #{self_distill_forward.1} parent=1 // pred_check
      _
    $region11: #{self_distill_forward.1} parent=1 // pred_check_branch
      %22 = sbr.rel (0) target = $region13
    $region12: #{self_distill_forward.1} parent=1 // pred_region
      _
    $region13: #{self_distill_forward.1} parent=1 // pred_fallthru
      _
    // Predicated region
    $region14: #{self_distill_forward.1} parent=1 // pred_check
      _
    $region15: #{self_distill_forward.1} parent=1 // pred_check_branch
      %24 = sbr.rel (0) target = $region17
    $region16: #{self_distill_forward.1} parent=1 // pred_region
      _
    $region17: #{self_distill_forward.1} parent=1 // pred_fallthru
      _
    // Predicated region
    $region18: #{self_distill_forward.1} parent=1 // pred_check
      _
    $region19: #{self_distill_forward.1} parent=1 // pred_check_branch
      %26 = sbr.rel (0) target = $region21
    $region20: #{self_distill_forward.1} parent=1 // pred_region
      _
    $region21: #{self_distill_forward.1} parent=1 // pred_fallthru
      _
    // Predicated region
    $region22: #{self_distill_forward.1} parent=1 // pred_check
      _
    $region23: #{self_distill_forward.1} parent=1 // pred_check_branch
      %28 = sbr.rel (0) target = $region25
    $region24: #{self_distill_forward.1} parent=1 // pred_region
      _
    $region25: #{self_distill_forward.1} parent=1 // pred_fallthru
      _
    // Predicated region
    $region26: #{self_distill_forward.1} parent=1 // pred_check
      _
    $region27: #{self_distill_forward.1} parent=1 // pred_check_branch
      %30 = sbr.rel (0) target = $region29
    $region28: #{self_distill_forward.1} parent=1 // pred_region
      _
    $region29: #{self_distill_forward.1} parent=1 // pred_fallthru
      _
    %v31 = vlaneseq
    %v32 = vand.u32 %v31, 127
    %v33 = vld [vmem:[%s0] sm:$0xff]
    %v34 = vld [vmem:[%s0 + $0x8] sm:$0xff]
    %35 = vset.pattern.permute.xlu0 0
    %36 = vperm.xlu0 %35, %v33
    %v37 = vpop.permute.xlu0 %36
    %38 = vset.pattern.permute.xlu0 0
    %39 = vperm.xlu0 %38, %v34
    %v40 = vpop.permute.xlu0 %39
    %vm41 = vcmp.eq.s32.totalorder %v32, %v37
    %vm42 = vcmp.eq.s32.totalorder %v32, %v40
    %v43 = vsel %vm41, 1, 0
    %v44 = vsel %vm42, 1, 0
    %v45 = vcvt.s32.f32 %v43
    %v46 = vcvt.s32.f32 %v44
    %v47 = vld [vmem:[%s2] sm:$0xff]
    %v48 = vld [vmem:[%s2 + $0x8] sm:$0xff]
    %v49 = vld [vmem:[%s2 + $0x10] sm:$0xff]
    %v50 = vld [vmem:[%s2 + $0x18] sm:$0xff]
    %v51 = vld [vmem:[%s2 + $0x20] sm:$0xff]
    %v52 = vld [vmem:[%s2 + $0x28] sm:$0xff]
    %v53 = vld [vmem:[%s2 + $0x30] sm:$0xff]
    %v54 = vld [vmem:[%s2 + $0x38] sm:$0xff]
    %v55 = vld [vmem:[%s2 + $0x40] sm:$0xff]
    %v56 = vld [vmem:[%s2 + $0x48] sm:$0xff]
    %v57 = vld [vmem:[%s2 + $0x50] sm:$0xff]
    %v58 = vld [vmem:[%s2 + $0x58] sm:$0xff]
    %v59 = vld [vmem:[%s2 + $0x60] sm:$0xff]
    %v60 = vld [vmem:[%s2 + $0x68] sm:$0xff]
    %v61 = vld [vmem:[%s2 + $0x70] sm:$0xff]
    %v62 = vld [vmem:[%s2 + $0x78] sm:$0xff]
    %63 = vmatpush.msra.mxu0 %v62
    %64 = vmatpush.msra.mxu0 %v61
    %65 = vmatpush.msra.mxu0 %v60
    %66 = vmatpush.msra.mxu0 %v59
    %67 = vmatpush.msra.mxu0 %v58
    %68 = vmatpush.msra.mxu0 %v57
    %69 = vmatpush.msra.mxu0 %v56
    %70 = vmatpush.msra.mxu0 %v55
    %71 = vmatpush.msra.mxu0 %v54
    %72 = vmatpush.msra.mxu0 %v53
    %73 = vmatpush.msra.mxu0 %v52
    %74 = vmatpush.msra.mxu0 %v51
    %75 = vmatpush.msra.mxu0 %v50
    %76 = vmatpush.msra.mxu0 %v49
    %77 = vmatpush.msra.mxu0 %v48
    %78 = vmatpush.msra.mxu0 %v47
    %79 = vmatmul.f32.gmra.mxu0 %v45
    %v80 = vpop.f32.mrf.mxu0
    %v81 = vadd.f32 0.0, %v80
    %82 = vmatmul.f32.gmra.mxu0 %v46
    %v83 = vpop.f32.mrf.mxu0
    %v84 = vadd.f32 0.0, %v83
    %85 = vdwg.mxu0
    %v86 = vld [vmem:[%s3] sm:$0xff]
    %v87 = vld [vmem:[%s3 + $0x8] sm:$0xff]
    %v88 = vld [vmem:[%s3 + $0x10] sm:$0xff]
    %v89 = vld [vmem:[%s3 + $0x18] sm:$0xff]
    %v90 = vld [vmem:[%s4] sm:$0x1]
    %v92 = vperm.slane %v90, 0
    %vm94 = vcmask 261120
    %v96 = vsel %vm94, %v81, 0
    %v99 = vsel %vm94, %v84, 0
    %101 = vmatpush.msra.mxu0 0.0
    %102 = vmatpush.msra.mxu0 0.0
    %103 = vmatpush.msra.mxu0 0.0
    %104 = vmatpush.msra.mxu0 0.0
    %105 = vmatpush.msra.mxu0 0.0
    %106 = vmatpush.msra.mxu0 0.0
    %107 = vmatpush.msra.mxu0 0.0
    %108 = vmatpush.msra.mxu0 0.0
    %109 = vmatpush.msra.mxu0 0.0
    %110 = vmatpush.msra.mxu0 0.0
    %111 = vmatpush.msra.mxu0 0.0
    %112 = vmatpush.msra.mxu0 0.0
    %113 = vmatpush.msra.mxu0 %v89
    %114 = vmatpush.msra.mxu0 %v88
    %115 = vmatpush.msra.mxu0 %v87
    %116 = vmatpush.msra.mxu0 %v86
    %117 = vmatmul.f32.gmra.mxu0 %v96
    %v118 = vpop.f32.mrf.mxu0
    %v119 = vadd.f32 %v92, %v118
    %120 = vmatmul.f32.gmra.mxu0 %v99
    %v121 = vpop.f32.mrf.mxu0
    %v122 = vadd.f32 %v92, %v121
    %123 = vdwg.mxu0
    %v124 = vtanh.pop %v119
    %v125 = vtanh.pop %v122
    %v126 = vld [vmem:[%s5] sm:$0xff]
    %v127 = vld [vmem:[%s5 + $0x8] sm:$0xff]
    %v128 = vld [vmem:[%s5 + $0x10] sm:$0xff]
    %v129 = vld [vmem:[%s5 + $0x18] sm:$0xff]
    %v130 = vld [vmem:[%s6] sm:$0x1]
    %v132 = vperm.slane %v130, 0
    %v135 = vsel %vm94, %v124, 0
    %v138 = vsel %vm94, %v125, 0
    %140 = vmatpush.msra.mxu0 0.0
    %141 = vmatpush.msra.mxu0 0.0
    %142 = vmatpush.msra.mxu0 0.0
    %143 = vmatpush.msra.mxu0 0.0
    %144 = vmatpush.msra.mxu0 0.0
    %145 = vmatpush.msra.mxu0 0.0
    %146 = vmatpush.msra.mxu0 0.0
    %147 = vmatpush.msra.mxu0 0.0
    %148 = vmatpush.msra.mxu0 0.0
    %149 = vmatpush.msra.mxu0 0.0
    %150 = vmatpush.msra.mxu0 0.0
    %151 = vmatpush.msra.mxu0 0.0
    %152 = vmatpush.msra.mxu0 %v129
    %153 = vmatpush.msra.mxu0 %v128
    %154 = vmatpush.msra.mxu0 %v127
    %155 = vmatpush.msra.mxu0 %v126
    %156 = vmatmul.f32.gmra.mxu0 %v135
    %v157 = vpop.f32.mrf.mxu0
    %v158 = vadd.f32 %v132, %v157
    %159 = vmatmul.f32.gmra.mxu0 %v138
    %v160 = vpop.f32.mrf.mxu0
    %v161 = vadd.f32 %v132, %v160
    %162 = vdwg.mxu0
    %163 = vst [vmem:[%s7] sm:$0xff] %v158
    %164 = vst [vmem:[%s7 + $0x8] sm:$0xff] %v161
    %165 = vmax.xlane.f32.xlu0 %v158
    %v166 = vpop.xlane.xlu0 %165
    %167 = vmax.xlane.f32.xlu0 %v161
    %v168 = vpop.xlane.xlu0 %167
    %v169 = vsub.f32 %v158, %v166
    %v170 = vsub.f32 %v161, %v168
    %v171 = vmul.f32 %v169, 1.442695
    %v172 = vpow.pop %v171
    %v173 = vmul.f32 %v170, 1.442695
    %v174 = vpow.pop %v173
    %175 = vadd.xlane.f32.xlu0 %v172
    %v176 = vpop.xlane.xlu0 %175
    %177 = vadd.xlane.f32.xlu0 %v174
    %v178 = vpop.xlane.xlu0 %177
    %v179 = vlog2.pop %v176
    %v180 = vmul.f32 %v179, 0.6931472
    %v181 = vlog2.pop %v178
    %v182 = vmul.f32 %v181, 0.6931472
    %v183 = vsub.f32 %v169, %v180
    %v184 = vsub.f32 %v170, %v182
    %v185 = vmul.f32 %v183, 1.442695
    %v186 = vpow.pop %v185
    %v187 = vmul.f32 %v184, 1.442695
    %v188 = vpow.pop %v187
    %v189 = vld [vmem:[%s1] sm:$0xff]
    %v190 = vld [vmem:[%s1 + $0x8] sm:$0xff]
    %191 = vset.pattern.permute.xlu0 0
    %192 = vperm.xlu0 %191, %v189
    %v193 = vpop.permute.xlu0 %192
    %194 = vset.pattern.permute.xlu0 0
    %195 = vperm.xlu0 %194, %v190
    %v196 = vpop.permute.xlu0 %195
    %vm197 = vcmp.eq.s32.totalorder %v32, %v193
    %vm198 = vcmp.eq.s32.totalorder %v32, %v196
    %v199 = vsel %vm197, 1, 0
    %v200 = vsel %vm198, 1, 0
    %v201 = vcvt.s32.f32 %v199
    %v202 = vcvt.s32.f32 %v200
    %vm203 = vcmp.ge.s32.totalorder %v189, 0
    %vm204 = vcmp.ge.s32.totalorder %v190, 0
    %v205 = vsel %vm203, 1, 0
    %v206 = vsel %vm204, 1, 0
    %v207 = vcvt.s32.f32 %v205
    %v208 = vcvt.s32.f32 %v206
    %v209 = vmul.f32 %v201, %v183
    %v210 = vmul.f32 %v202, %v184
    %211 = vadd.xlane.f32.xlu0 %v209
    %v212 = vpop.xlane.xlu0 %211
    %213 = vadd.xlane.f32.xlu0 %v210
    %v214 = vpop.xlane.xlu0 %213
    %v215 = vsub.f32 0.0, %v212
    %v216 = vsub.f32 0.0, %v214
    %v217 = vmul.f32 %v215, %v207
    %v218 = vmul.f32 %v216, %v208
    %vm219 = vcmask 7168
    %v220 = vsel %vm219, %v207, 0.0
    %v221 = vsel %vm219, %v208, 0.0
    %v222 = vadd.f32 %v220, %v221
    %223 = vadd.xlane.f32.xlu0 %v222
    %v224 = vpop.xlane.xlu0 %223
    %v225 = vrot.slane %v224, 4
    %v226 = vadd.f32 %v224, %v225
    %v227 = vrot.slane %v226, 2
    %v228 = vadd.f32 %v226, %v227
    %v229 = vrot.slane %v228, 1
    %v230 = vadd.f32 %v228, %v229
    %s231 = vtos %v230
    %s232 = smax.f32 %s231, 1.0
    %v233 = vsel %vm219, %v217, 0.0
    %v234 = vsel %vm219, %v218, 0.0
    %v235 = vadd.f32 %v233, %v234
    %236 = vadd.xlane.f32.xlu0 %v235
    %v237 = vpop.xlane.xlu0 %236
    %v238 = vrot.slane %v237, 4
    %v239 = vadd.f32 %v237, %v238
    %v240 = vrot.slane %v239, 2
    %v241 = vadd.f32 %v239, %v240
    %v242 = vrot.slane %v241, 1
    %v243 = vadd.f32 %v241, %v242
    %s244 = vtos %v243
    %v245 = vstv %s232
    %v246 = vrcp.pop %v245
    %v247 = vmul.f32 %v245, %v246
    %v248 = vsub.f32 1.0, %v247
    %v249 = vmul.f32 %v246, %v248
    %v250 = vadd.f32 %v246, %v249
    %vm251 = vweird.f32 %v245
    %vm252 = vweird.f32 %v246
    %vm253 = vmor %vm251, %vm252
    %v254 = vsel %vm253, %v246, %v250
    %v255 = vand.u32 2147483647, %v245
    %vm256 = vcmp.eq.f32.partialorder %v255, 8.507059e+37
    %v257 = vand.u32 %v245, 2147483648
    %v258 = vor.u32 1.1754944e-38, %v257
    %v259 = vsel %vm256, %v258, %v254
    %s260 = vtos %v259
    %s261 = smul.f32 %s244, %s260
    %s262 = scalar_lea.smem [#allocation2], 0
    %263 = sst [smem:[%s262]] %s261
    %v264 = vsub.f32 %v183, %v183
    %v265 = vsub.f32 %v184, %v184
    %v266 = vmul.f32 %v186, %v264
    %v267 = vmul.f32 %v188, %v265
    %268 = vadd.xlane.f32.xlu0 %v266
    %v269 = vpop.xlane.xlu0 %268
    %270 = vadd.xlane.f32.xlu0 %v267
    %v271 = vpop.xlane.xlu0 %270
    %v272 = vsel %vm219, %v269, 0.0
    %v273 = vsel %vm219, %v271, 0.0
    %v274 = vadd.f32 %v272, %v273
    %275 = vadd.xlane.f32.xlu0 %v274
    %v276 = vpop.xlane.xlu0 %275
    %v277 = vrot.slane %v276, 4
    %v278 = vadd.f32 %v276, %v277
    %v279 = vrot.slane %v278, 2
    %v280 = vadd.f32 %v278, %v279
    %v281 = vrot.slane %v280, 1
    %v282 = vadd.f32 %v280, %v281
    %s283 = vtos %v282
    %v284 = vrcp.pop 16.0
    %v285 = vmul.f32 16.0, %v284
    %v286 = vsub.f32 1.0, %v285
    %v287 = vmul.f32 %v284, %v286
    %v288 = vadd.f32 %v284, %v287
    %vm289 = vweird.f32 %v284
    %v290 = vsel %vm289, %v284, %v288
    %s291 = vtos %v290
    %s292 = smul.f32 %s283, %s291
    %s293 = scalar_lea.smem [#allocation4], 0
    %294 = sst [smem:[%s293]] %s292
    // Predicated region
    $region30: #{self_distill_forward.1} parent=1 // pred_check
      _
    $region31: #{self_distill_forward.1} parent=1 // pred_check_branch
      %296 = sbr.rel (0) target = $region33
    $region32: #{self_distill_forward.1} parent=1 // pred_region
      _
    $region33: #{self_distill_forward.1} parent=1 // pred_fallthru
      _
    // Predicated region
    $region34: #{self_distill_forward.1} parent=1 // pred_check
      _
    $region35: #{self_distill_forward.1} parent=1 // pred_check_branch
      %298 = sbr.rel (0) target = $region37
    $region36: #{self_distill_forward.1} parent=1 // pred_region
      %300 = vsyncadd [#allocation3], 0
      %s302 = sshll.u32 %s8, 4
      %s303 = int_to_ptr.hbm [resolvable:$true] %s302
      %305 = dma.smem_to_hbm [#allocation2], 16, %s303, [#allocation3]
    $region37: #{self_distill_forward.1} parent=1 // pred_fallthru
      _
    // Predicated region
    $region38: #{self_distill_forward.1} parent=1 // pred_check
      _
    $region39: #{self_distill_forward.1} parent=1 // pred_check_branch
      %307 = sbr.rel (0) target = $region41
    $region40: #{self_distill_forward.1} parent=1 // pred_region
      %309 = vsyncadd [#allocation5], 0
      %s311 = sshll.u32 %s9, 4
      %s312 = int_to_ptr.hbm [resolvable:$true] %s311
      %314 = dma.smem_to_hbm [#allocation4], 16, %s312, [#allocation5]
    $region41: #{self_distill_forward.1} parent=1 // pred_fallthru
      _
    // Predicated region
    $region42: #{self_distill_forward.1} parent=1 // pred_check
      _
    $region43: #{self_distill_forward.1} parent=1 // pred_check_branch
      %316 = sbr.rel (0) target = $region45
    $region44: #{self_distill_forward.1} parent=1 // pred_region
      _
    $region45: #{self_distill_forward.1} parent=1 // pred_fallthru
      _
    // Predicated region
    $region46: #{self_distill_forward.1} parent=1 // pred_check
      _
    $region47: #{self_distill_forward.1} parent=1 // pred_check_branch
      %318 = sbr.rel (0) target = $region49
    $region48: #{self_distill_forward.1} parent=1 // pred_region
      %320 = dma.done [#allocation3], 16
    $region49: #{self_distill_forward.1} parent=1 // pred_fallthru
      _
    // Predicated region
    $region50: #{self_distill_forward.1} parent=1 // pred_check
      _
    $region51: #{self_distill_forward.1} parent=1 // pred_check_branch
      %322 = sbr.rel (0) target = $region53
    $region52: #{self_distill_forward.1} parent=1 // pred_region
      %324 = dma.done [#allocation5], 16
    $region53: #{self_distill_forward.1} parent=1 // pred_fallthru
      _
    %325 = sfence
    %326 = vsyncpa [#allocation3], 1
    %327 = vsyncpa [#allocation5], 1

</llo_original>
